<compile_context>
chip_gen: v7x
topology: tpu7x:2x2x1
jax: 0.10.0
libtpu: 0.0.40
codegen_flags: <defaults>
</compile_context>

<pallas_src>
import jax
import jax.numpy as jnp
from jax.experimental import pallas as pl
from jax.experimental.pallas import tpu as pltpu


LANE = 128          # TPU lane width (pad hidden dim for lane-dense matmuls)
MAX_TILE_B = 1024   # upper bound on batch rows per grid step


def _round_up(n, m):
    return (n + m - 1) // m * m


def _pick_tile_b(batch):
    # Big tiles for the HBM roofline / per-step overhead, but keep ~4 grid
    # steps so v7x's two TensorCores both get work, and never allocate a tile
    # (much) larger than the batch itself.
    t = _round_up(pl.cdiv(batch, 4), LANE)
    t = max(LANE, min(MAX_TILE_B, t))
    return min(t, _round_up(batch, 8))


def actor_kernel(x_ref, w1_ref, b1_ref, w2_ref, b2_ref, out_ref):
    num_actions = out_ref.shape[-1]

    # Layer 1: (TILE_B, in_dim) @ (in_dim, N1_pad) on the MXU, f32 accumulate.
    h = jnp.dot(x_ref[...], w1_ref[...],
                preferred_element_type=jnp.float32) + b1_ref[...]
    h = jnp.maximum(h, 0.0).astype(w2_ref.dtype)            # relu

    # Layer 2: the 1/0.1 scale is pre-folded into w2 (padded to 128 lanes for a
    # clean MXU tile); keep only the real action columns for the softmax.
    logits_pad = jnp.dot(h, w2_ref[...], preferred_element_type=jnp.float32)
    logits = logits_pad[:, :num_actions] + b2_ref[...]       # (TILE_B, A)

    # Numerically-stable softmax along the (narrow) lane axis.
    m = jnp.max(logits, axis=-1, keepdims=True)
    e = jnp.exp(logits - m)
    denom = jnp.sum(e, axis=-1, keepdims=True)
    # EUP approximate reciprocal (separate VLIW slot) + one Newton-Raphson step
    # to restore ~f32 accuracy; avoids a VALU divide over the tile.
    inv = pl.reciprocal(denom, approx=True)
    inv = inv * (2.0 - denom * inv)
    p = e * inv

    out_ref[...] = jnp.clip(p, 1e-10, 1.0 - 1e-10).astype(out_ref.dtype)


def prepare_actor_params(w1, b1, w2, b2, compute_dtype=jnp.float32):
    """One-time parameter prep (call once, reuse across forward calls).

    * w1 keeps its K dim (= 32 + 2*hidden) un-padded so x needs no K padding;
      only its output dim is padded to the 128-lane width.
    * The `dense / 0.1` scale is folded into w2 (zero kernel cost); w2's action
      dim is padded to 128 only for MXU tile shape — the kernel slices the real
      action columns back out before softmax.
    * Matmul operands are cast to `compute_dtype` (bf16 halves the x HBM read
      on every generation; keep f32 when bit-tight accuracy matters).  Biases
      stay f32 (added post-MXU in f32).

    Weight layout convention: w1 is (in_dim, n1) and w2 is (n1, num_actions),
    i.e. already the transpose of PyTorch's nn.Linear.weight.
    """
    in_dim, n1 = w1.shape
    n1_w2, num_actions = w2.shape
    assert n1 == n1_w2, "l1 output dim must match l2 input dim"

    n1_pad = _round_up(n1, LANE)
    a_pad = _round_up(num_actions, LANE)

    w1_p = jnp.zeros((in_dim, n1_pad), compute_dtype).at[:, :n1].set(
        w1.astype(compute_dtype))
    b1_p = jnp.zeros((1, n1_pad), jnp.float32).at[0, :n1].set(b1.astype(jnp.float32))

    # Fold the `/ 0.1` activation scale into w2 (zero kernel cost).
    w2_scaled = (w2.astype(jnp.float32) / 0.1).astype(compute_dtype)
    w2_p = jnp.zeros((n1_pad, a_pad), compute_dtype).at[:n1, :num_actions].set(w2_scaled)

    b2_p = b2.astype(jnp.float32).reshape(1, num_actions)

    return dict(w1=w1_p, b1=b1_p, w2=w2_p, b2=b2_p,
                in_dim=in_dim, num_actions=num_actions, compute_dtype=compute_dtype)


def actor_forward(x, params):
    """x: (B, 32 + 2*hidden); params from prepare_actor_params.

    For the bf16 bandwidth win, feed x already in params['compute_dtype'];
    otherwise it is cast here (a cheap extra pass the caller can avoid).
    """
    w1, b1, w2, b2 = params["w1"], params["b1"], params["w2"], params["b2"]
    in_dim = params["in_dim"]
    num_actions = params["num_actions"]
    cdt = params["compute_dtype"]

    B = x.shape[0]
    assert x.shape[1] == in_dim
    if x.dtype != cdt:
        x = x.astype(cdt)

    n1_pad = w1.shape[1]
    a_pad = w2.shape[1]
    tile_b = _pick_tile_b(B)
    grid = (pl.cdiv(B, tile_b),)

    return pl.pallas_call(
        actor_kernel,
        out_shape=jax.ShapeDtypeStruct((B, num_actions), jnp.float32),
        grid=grid,
        in_specs=[
            # x: tiled along batch only; last block dim == full in_dim (no K pad).
            pl.BlockSpec((tile_b, in_dim), lambda i: (i, 0)),
            # Weights / biases: VMEM-resident across the whole grid.
            pl.BlockSpec((in_dim, n1_pad), lambda i: (0, 0)),
            pl.BlockSpec((1, n1_pad), lambda i: (0, 0)),
            pl.BlockSpec((n1_pad, a_pad), lambda i: (0, 0)),
            pl.BlockSpec((1, num_actions), lambda i: (0, 0)),
        ],
        # Narrow, un-padded output block (full-dim last axis): 16x less writeback.
        out_specs=pl.BlockSpec((tile_b, num_actions), lambda i: (i, 0)),
        compiler_params=pltpu.CompilerParams(
            dimension_semantics=("parallel",),   # shard batch tiles across TCs (v7x)
        ),
    )(x, w1, b1, w2, b2)


def actor_reference(x, w1, b1, w2, b2):
    h = jnp.maximum(x @ w1 + b1, 0.0)
    logits = (h / 0.1) @ w2 + b2
    p = jax.nn.softmax(logits, axis=-1)
    return jnp.clip(p, 1e-10, 1.0 - 1e-10)


if __name__ == "__main__":
    hidden_size = 32
    num_actions = 8
    in_dim = 32 + 2 * hidden_size          # 96
    l1_out = 2 * hidden_size               # 64

    key = jax.random.PRNGKey(0)
    k1, k2, k3, k4, kx1, kx2 = jax.random.split(key, 6)

    # Deterministic synthetic parameters (roughly PyTorch-Linear-scale uniform init).
    lim1 = 1.0 / jnp.sqrt(in_dim)
    w1 = jax.random.uniform(k1, (in_dim, l1_out), minval=-lim1, maxval=lim1, dtype=jnp.float32)
    b1 = jax.random.uniform(k2, (l1_out,), minval=-lim1, maxval=lim1, dtype=jnp.float32)
    lim2 = 1.0 / jnp.sqrt(l1_out)
    w2 = jax.random.uniform(k3, (l1_out, num_actions), minval=-lim2, maxval=lim2, dtype=jnp.float32)
    b2 = jax.random.uniform(k4, (num_actions,), minval=-lim2, maxval=lim2, dtype=jnp.float32)

    # One-time parameter prep (padding + scale folding), reused across calls.
    params_f32 = prepare_actor_params(w1, b1, w2, b2, compute_dtype=jnp.float32)
    params_bf16 = prepare_actor_params(w1, b1, w2, b2, compute_dtype=jnp.bfloat16)

    # Small batch (single, partial grid step) and a larger batch that exercises
    # multiple grid steps plus a partial trailing tile.
    for kx, batch in ((kx1, 8), (kx2, 1000)):
        x = jax.random.normal(kx, (batch, in_dim), dtype=jnp.float32)
        ref = actor_reference(x, w1, b1, w2, b2)

        # f32 path: tight correctness check.
        out = jax.block_until_ready(actor_forward(x, params_f32))
        assert out.shape == (batch, num_actions)
        assert jnp.allclose(out, ref, atol=1e-4, rtol=1e-4), "f32 mismatch vs reference"
        assert jnp.allclose(jnp.sum(out, axis=-1), 1.0, atol=1e-4)

        # bf16 path: halves the dominant x HBM read; loosened tolerance vs the
        # f32 reference (acceptable for a sampled policy).
        out_bf = jax.block_until_ready(
            actor_forward(x.astype(jnp.bfloat16), params_bf16))
        assert out_bf.shape == (batch, num_actions)
        assert jnp.allclose(out_bf, ref, atol=8e-2), "bf16 mismatch vs reference"
        assert jnp.allclose(jnp.sum(out_bf, axis=-1), 1.0, atol=2e-3)

    print("KERNEL_OK")
</pallas_src>

<mosaic_0001>
module attributes {stable_mosaic.version = 11 : i64} {
  func.func @actor_kernel(%arg0: i32, %arg1: memref<8x96xf32, #tpu.memory_space<vmem>>, %arg2: memref<96x128xf32, #tpu.memory_space<vmem>>, %arg3: memref<1x128xf32, #tpu.memory_space<vmem>>, %arg4: memref<128x128xf32, #tpu.memory_space<vmem>>, %arg5: memref<1x8xf32, #tpu.memory_space<vmem>>, %arg6: memref<8x8xf32, #tpu.memory_space<vmem>>) attributes {dimension_semantics = [#tpu.dimension_semantics<parallel>], iteration_bounds = array<i64: 1>, scalar_prefetch = 0 : i64, scratch_operands = 0 : i64, tpu.core_type = #tpu.core_type<tc>, window_params = [{transform_indices = @transform_0, window_bounds = array<i64: 8, 96>}, {pipeline_mode = #tpu.pipeline_mode<synchronous>, transform_indices = @transform_1, window_bounds = array<i64: 96, 128>}, {pipeline_mode = #tpu.pipeline_mode<synchronous>, transform_indices = @transform_2, window_bounds = array<i64: 1, 128>}, {pipeline_mode = #tpu.pipeline_mode<synchronous>, transform_indices = @transform_3, window_bounds = array<i64: 128, 128>}, {pipeline_mode = #tpu.pipeline_mode<synchronous>, transform_indices = @transform_4, window_bounds = array<i64: 1, 8>}, {transform_indices = @transform_5, window_bounds = array<i64: 8, 8>}]} {
    %c0 = arith.constant 0 : index
    %c0_0 = arith.constant 0 : index
    %0 = vector.load %arg1[%c0, %c0_0] : memref<8x96xf32, #tpu.memory_space<vmem>>, vector<8x96xf32>
    %c0_1 = arith.constant 0 : index
    %c0_2 = arith.constant 0 : index
    %1 = vector.load %arg2[%c0_1, %c0_2] : memref<96x128xf32, #tpu.memory_space<vmem>>, vector<96x128xf32>
    %cst = arith.constant dense<0.000000e+00> : vector<8x128xf32>
    %2 = tpu.matmul %0, %1, %cst {dimension_numbers = #tpu.dot_dimension_numbers<[1], [0], [0], [1], [0, 0, 1, 1], [], []>} : vector<8x96xf32>, vector<96x128xf32>, vector<8x128xf32> -> vector<8x128xf32>
    %c0_3 = arith.constant 0 : index
    %c0_4 = arith.constant 0 : index
    %3 = vector.load %arg3[%c0_3, %c0_4] : memref<1x128xf32, #tpu.memory_space<vmem>>, vector<1x128xf32>
    %4 = vector.broadcast %3 : vector<1x128xf32> to vector<8x128xf32>
    %5 = arith.addf %2, %4 : vector<8x128xf32>
    %cst_5 = arith.constant 0.000000e+00 : f32
    %6 = vector.broadcast %cst_5 : f32 to vector<8x128xf32>
    %7 = arith.maximumf %5, %6 : vector<8x128xf32>
    %c0_6 = arith.constant 0 : index
    %c0_7 = arith.constant 0 : index
    %8 = vector.load %arg4[%c0_6, %c0_7] : memref<128x128xf32, #tpu.memory_space<vmem>>, vector<128x128xf32>
    %cst_8 = arith.constant dense<0.000000e+00> : vector<8x128xf32>
    %9 = tpu.matmul %7, %8, %cst_8 {dimension_numbers = #tpu.dot_dimension_numbers<[1], [0], [0], [1], [0, 0, 1, 1], [], []>} : vector<8x128xf32>, vector<128x128xf32>, vector<8x128xf32> -> vector<8x128xf32>
    %10 = vector.extract_strided_slice %9 {offsets = [0, 0], sizes = [8, 8], strides = [1, 1]} : vector<8x128xf32> to vector<8x8xf32>
    %c0_9 = arith.constant 0 : index
    %c0_10 = arith.constant 0 : index
    %11 = vector.load %arg5[%c0_9, %c0_10] : memref<1x8xf32, #tpu.memory_space<vmem>>, vector<1x8xf32>
    %12 = vector.broadcast %11 : vector<1x8xf32> to vector<8x8xf32>
    %13 = arith.addf %10, %12 : vector<8x8xf32>
    %cst_11 = arith.constant dense<0xFF800000> : vector<8xf32>
    %14 = vector.multi_reduction <maximumf>, %13, %cst_11 [1] : vector<8x8xf32> to vector<8xf32>
    %15 = vector.shape_cast %14 : vector<8xf32> to vector<8x1xf32>
    %16 = vector.broadcast %15 : vector<8x1xf32> to vector<8x8xf32>
    %17 = arith.subf %13, %16 : vector<8x8xf32>
    %18 = math.exp %17 : vector<8x8xf32>
    %cst_12 = arith.constant dense<0.000000e+00> : vector<8xf32>
    %19 = vector.multi_reduction <add>, %18, %cst_12 [1] : vector<8x8xf32> to vector<8xf32>
    %20 = vector.shape_cast %19 : vector<8xf32> to vector<8x1xf32>
    %21 = tpu.reciprocal %20 {approx = true} : vector<8x1xf32> -> vector<8x1xf32>
    %22 = arith.mulf %20, %21 : vector<8x1xf32>
    %cst_13 = arith.constant 2.000000e+00 : f32
    %23 = vector.broadcast %cst_13 : f32 to vector<8x1xf32>
    %24 = arith.subf %23, %22 : vector<8x1xf32>
    %25 = arith.mulf %21, %24 : vector<8x1xf32>
    %26 = vector.broadcast %25 : vector<8x1xf32> to vector<8x8xf32>
    %27 = arith.mulf %18, %26 : vector<8x8xf32>
    %cst_14 = arith.constant 1.000000e-10 : f32
    %cst_15 = arith.constant 1.000000e+00 : f32
    %28 = vector.broadcast %cst_14 : f32 to vector<8x8xf32>
    %29 = arith.maximumf %28, %27 : vector<8x8xf32>
    %30 = vector.broadcast %cst_15 : f32 to vector<8x8xf32>
    %31 = arith.minimumf %30, %29 : vector<8x8xf32>
    %c0_16 = arith.constant 0 : index
    %c0_17 = arith.constant 0 : index
    %32 = vector.load %arg6[%c0_16, %c0_17] : memref<8x8xf32, #tpu.memory_space<vmem>>, vector<8x8xf32>
    tpu.vector_store %arg6[%c0_16, %c0_17], %31 {strides = array<i32>} : memref<8x8xf32, #tpu.memory_space<vmem>>, vector<8x8xf32>,
    return
  }
  func.func @transform_0(%arg0: i32) -> (i32, i32) {
    %c0_i32 = arith.constant 0 : i32
    %c0_i32_0 = arith.constant 0 : i32
    return %arg0, %c0_i32 : i32, i32
  }
  func.func @transform_1(%arg0: i32) -> (i32, i32) {
    %c0_i32 = arith.constant 0 : i32
    %c0_i32_0 = arith.constant 0 : i32
    %c0_i32_1 = arith.constant 0 : i32
    return %c0_i32, %c0_i32_0 : i32, i32
  }
  func.func @transform_2(%arg0: i32) -> (i32, i32) {
    %c0_i32 = arith.constant 0 : i32
    %c0_i32_0 = arith.constant 0 : i32
    %c0_i32_1 = arith.constant 0 : i32
    return %c0_i32, %c0_i32_0 : i32, i32
  }
  func.func @transform_3(%arg0: i32) -> (i32, i32) {
    %c0_i32 = arith.constant 0 : i32
    %c0_i32_0 = arith.constant 0 : i32
    %c0_i32_1 = arith.constant 0 : i32
    return %c0_i32, %c0_i32_0 : i32, i32
  }
  func.func @transform_4(%arg0: i32) -> (i32, i32) {
    %c0_i32 = arith.constant 0 : i32
    %c0_i32_0 = arith.constant 0 : i32
    %c0_i32_1 = arith.constant 0 : i32
    return %c0_i32, %c0_i32_0 : i32, i32
  }
  func.func @transform_5(%arg0: i32) -> (i32, i32) {
    %c0_i32 = arith.constant 0 : i32
    %c0_i32_0 = arith.constant 0 : i32
    return %arg0, %c0_i32 : i32, i32
  }
}

</mosaic_0001>

<llo_original>
// kernel: tpu_custom_call.1
$region0: #{tpu_custom_call.1}
  #allocation0 [shape = 'u32[]', space=smem, size = 0x4, offset = 0x4, fixed_abs, tag = 'smem constant byte address 0x4 - core index']
  #allocation1 [shape = 'u32[144,128]{1,0:T(1,128)}', space=vmem, size = 0x12000, scoped, tag = 'internal scratch']
  %s0 = inlined_call_operand.hbm [shape: f32[8,96], index: 0, kind: input, shape index: {}]
  %s1 = inlined_call_operand.hbm [shape: f32[96,128], index: 1, kind: input, shape index: {}]
  %s2 = inlined_call_operand.vmem [shape: f32[1,128], index: 2, kind: input, shape index: {}]
  %s3 = inlined_call_operand.hbm [shape: f32[128,128], index: 3, kind: input, shape index: {}]
  %s4 = inlined_call_operand.vmem [shape: f32[1,8], index: 4, kind: input, shape index: {}]
  %s5 = inlined_call_operand.hbm [shape: f32[8,8], index: 5, kind: output, shape index: {}]
  %s6 = sld [smem:[#allocation0]]
  $region42: #{tpu_custom_call.1} parent=0
    _
  %s8 = ssub.s32 1, %s6
  %s9 = scalar_select 0, %s8, %s6
  $region1: #{tpu_custom_call.1} parent=0
    #allocation2 [shape = 'u8[4096]{0}', space=vmem, size = 0x1000, scoped, tag = 'input window, operand 0, single buffered']
    #allocation3 [shape = 's32[1]{0}', space=sflag, size = 0x4, scoped, tag = 'scoped memory for tpu_custom_call.1']
    #allocation4 [shape = 's32[1]{0}', space=sflag, size = 0x4, scoped, tag = 'scoped memory for tpu_custom_call.1']
    #allocation5 [shape = 'u8[49152]{0}', space=vmem, size = 0xc000, scoped, tag = 'input window, operand 1, single buffered']
    #allocation6 [shape = 's32[1]{0}', space=sflag, size = 0x4, scoped, tag = 'scoped memory for tpu_custom_call.1']
    #allocation7 [shape = 'u8[65536]{0}', space=vmem, size = 0x10000, scoped, tag = 'input window, operand 3, single buffered']
    #allocation8 [shape = 'u8[4096]{0}', space=vmem, size = 0x1000, scoped, tag = 'output window, operand 0, single buffered']
    %10 = vsyncpa [#allocation3], 0
    %11 = vsyncpa [#allocation6], 0
    %12 = vsyncpa [#allocation4], 0
    // Predicated region
    $region2: #{tpu_custom_call.1} parent=1 // pred_check
      _
    $region3: #{tpu_custom_call.1} parent=1 // pred_check_branch
      %14 = sbr.rel (0) target = $region5
    $region4: #{tpu_custom_call.1} parent=1 // pred_region
      %s16 = ssub.s32 128, 128
      %17 = vsyncadd [#allocation3], %s16
      %s19 = sshll.u32 [#allocation2], 4
      %s20 = int_to_ptr.vmem [resolvable:$true] %s19
      %22 = dma.hbm_to_vmem [thread:$0]  %s0, 128, %s20, [#allocation3]
    $region5: #{tpu_custom_call.1} parent=1 // pred_fallthru
      _
    // Predicated region
    $region6: #{tpu_custom_call.1} parent=1 // pred_check
      _
    $region7: #{tpu_custom_call.1} parent=1 // pred_check_branch
      %24 = sbr.rel (0) target = $region9
    $region8: #{tpu_custom_call.1} parent=1 // pred_region
      %s26 = ssub.s32 1536, 1536
      %27 = vsyncadd [#allocation6], %s26
      %s28 = sshll.u32 [#allocation5], 4
      %s29 = int_to_ptr.vmem [resolvable:$true] %s28
      %34 = dma.hbm_to_vmem [thread:$0]  %s1, 1536, %s29, [#allocation6], 128, 128, 8
    $region9: #{tpu_custom_call.1} parent=1 // pred_fallthru
      _
    // Predicated region
    $region10: #{tpu_custom_call.1} parent=1 // pred_check
      _
    $region11: #{tpu_custom_call.1} parent=1 // pred_check_branch
      %36 = sbr.rel (0) target = $region13
    $region12: #{tpu_custom_call.1} parent=1 // pred_region
      _
    $region13: #{tpu_custom_call.1} parent=1 // pred_fallthru
      _
    // Predicated region
    $region14: #{tpu_custom_call.1} parent=1 // pred_check
      _
    $region15: #{tpu_custom_call.1} parent=1 // pred_check_branch
      %38 = sbr.rel (0) target = $region17
    $region16: #{tpu_custom_call.1} parent=1 // pred_region
      %s40 = ssub.s32 2048, 2048
      %41 = vsyncadd [#allocation6], %s40
      %s42 = sshll.u32 [#allocation7], 4
      %s43 = int_to_ptr.vmem [resolvable:$true] %s42
      %48 = dma.hbm_to_vmem [thread:$0]  %s3, 2048, %s43, [#allocation6], 128, 128, 8
    $region17: #{tpu_custom_call.1} parent=1 // pred_fallthru
      _
    // Predicated region
    $region18: #{tpu_custom_call.1} parent=1 // pred_check
      _
    $region19: #{tpu_custom_call.1} parent=1 // pred_check_branch
      %50 = sbr.rel (0) target = $region21
    $region20: #{tpu_custom_call.1} parent=1 // pred_region
      _
    $region21: #{tpu_custom_call.1} parent=1 // pred_fallthru
      _
    // Predicated region
    $region22: #{tpu_custom_call.1} parent=1 // pred_check
      _
    $region23: #{tpu_custom_call.1} parent=1 // pred_check_branch
      %52 = sbr.rel (0) target = $region25
    $region24: #{tpu_custom_call.1} parent=1 // pred_region
      %53 = dma.done [#allocation3], 128
    $region25: #{tpu_custom_call.1} parent=1 // pred_fallthru
      _
    // Predicated region
    $region26: #{tpu_custom_call.1} parent=1 // pred_check
      _
    $region27: #{tpu_custom_call.1} parent=1 // pred_check_branch
      %55 = sbr.rel (0) target = $region29
    $region28: #{tpu_custom_call.1} parent=1 // pred_region
      %56 = dma.done [#allocation6], 1536
    $region29: #{tpu_custom_call.1} parent=1 // pred_fallthru
      _
    // Predicated region
    $region30: #{tpu_custom_call.1} parent=1 // pred_check
      _
    $region31: #{tpu_custom_call.1} parent=1 // pred_check_branch
      %58 = sbr.rel (0) target = $region33
    $region32: #{tpu_custom_call.1} parent=1 // pred_region
      %59 = dma.done [#allocation6], 2048
    $region33: #{tpu_custom_call.1} parent=1 // pred_fallthru
      _
    %v60 = vld [vmem:[#allocation2] sm:$0xff]
    %v61 = vld [vmem:[#allocation5] sm:$0xff]
    %v62 = vld [vmem:[#allocation5 + $0x8] sm:$0xff]
    %v63 = vld [vmem:[#allocation5 + $0x10] sm:$0xff]
    %v64 = vld [vmem:[#allocation5 + $0x18] sm:$0xff]
    %v65 = vld [vmem:[#allocation5 + $0x20] sm:$0xff]
    %v66 = vld [vmem:[#allocation5 + $0x28] sm:$0xff]
    %v67 = vld [vmem:[#allocation5 + $0x30] sm:$0xff]
    %v68 = vld [vmem:[#allocation5 + $0x38] sm:$0xff]
    %v69 = vld [vmem:[#allocation5 + $0x40] sm:$0xff]
    %v70 = vld [vmem:[#allocation5 + $0x48] sm:$0xff]
    %v71 = vld [vmem:[#allocation5 + $0x50] sm:$0xff]
    %v72 = vld [vmem:[#allocation5 + $0x58] sm:$0xff]
    %v73 = vld [vmem:[%s2] sm:$0x1]
    %v75 = vlaneseq
    %v76 = vshrl.u32 %v75, 7
    %v77 = vsub.s32 0, %v76
    %v78 = vrot.slane %v73, %v77
    %vm80 = vcmask 785408
    %v82 = vsel %vm80, %v60, 0
    %84 = vmatprep.subr.mxu0 0.0
    %85 = vmatpush1.msra.mxu0 %v61
    %86 = vmatprep.subr.mxu0 0.0
    %87 = vmatpush1.msra.mxu0 %v62
    %88 = vmatprep.subr.mxu0 0.0
    %89 = vmatpush1.msra.mxu0 %v63
    %90 = vmatprep.subr.mxu0 0.0
    %91 = vmatpush1.msra.mxu0 %v64
    %92 = vmatprep.subr.mxu0 0.0
    %93 = vmatpush1.msra.mxu0 %v65
    %94 = vmatprep.subr.mxu0 0.0
    %95 = vmatpush1.msra.mxu0 %v66
    %96 = vmatprep.subr.mxu0 0.0
    %97 = vmatpush1.msra.mxu0 %v67
    %98 = vmatprep.subr.mxu0 0.0
    %99 = vmatpush1.msra.mxu0 %v68
    %100 = vmatprep.subr.mxu0 0.0
    %101 = vmatpush1.msra.mxu0 %v69
    %102 = vmatprep.subr.mxu0 0.0
    %103 = vmatpush1.msra.mxu0 %v70
    %104 = vmatprep.subr.mxu0 0.0
    %105 = vmatpush1.msra.mxu0 %v71
    %106 = vmatprep.subr.mxu0 0.0
    %107 = vmatpush1.msra.mxu0 %v72
    %108 = vmatprep.subr.mxu0 0.0
    %109 = vmatpush1.msra.mxu0 0.0
    %110 = vmatprep.subr.mxu0 0.0
    %111 = vmatpush1.msra.mxu0 0.0
    %112 = vmatprep.subr.mxu0 0.0
    %113 = vmatpush1.msra.mxu0 0.0
    %114 = vmatprep.subr.mxu0 0.0
    %115 = vmatpush1.msra.mxu0 0.0
    %116 = vmatprep.subr.mxu0 0.0
    %117 = vmatpush1.msra.mxu0 0.0
    %118 = vmatprep.subr.mxu0 0.0
    %119 = vmatpush1.msra.mxu0 0.0
    %120 = vmatprep.subr.mxu0 0.0
    %121 = vmatpush1.msra.mxu0 0.0
    %122 = vmatprep.subr.mxu0 0.0
    %123 = vmatpush1.msra.mxu0 0.0
    %124 = vmatprep.subr.mxu0 0.0
    %125 = vmatpush1.msra.mxu0 0.0
    %126 = vmatprep.subr.mxu0 0.0
    %127 = vmatpush1.msra.mxu0 0.0
    %128 = vmatprep.subr.mxu0 0.0
    %129 = vmatpush1.msra.mxu0 0.0
    %130 = vmatprep.subr.mxu0 0.0
    %131 = vmatpush1.msra.mxu0 0.0
    %132 = vmatprep.subr.mxu0 0.0
    %133 = vmatpush1.msra.mxu0 0.0
    %134 = vmatprep.subr.mxu0 0.0
    %135 = vmatpush1.msra.mxu0 0.0
    %136 = vmatprep.subr.mxu0 0.0
    %137 = vmatpush1.msra.mxu0 0.0
    %138 = vmatprep.subr.mxu0 0.0
    %139 = vmatpush1.msra.mxu0 0.0
    %140 = vmatprep.subr.mxu0 0.0
    %141 = vmatpush1.msra.mxu0 0.0
    %142 = vmatprep.subr.mxu0 0.0
    %143 = vmatpush1.msra.mxu0 0.0
    %144 = vmatprep.subr.mxu0 0.0
    %145 = vmatpush1.msra.mxu0 0.0
    %146 = vmatprep.subr.mxu0 0.0
    %147 = vmatpush1.msra.mxu0 0.0
    %148 = vmatprep.mubr.f32.mxu0 0.0
    %149 = vmatmul.mubr.f32.gmra.mrb[0].mxu0 %v82
    %v150 = vpop.f32.mrb[0].mxu0
    %v151 = vadd.f32 %v78, %v150
    %v152 = vpop.f32.mrb[0].mxu0
    %153 = vdwg.mxu0
    %v154 = vmax.f32 %v151, 0.0
    %v155 = vld [vmem:[#allocation7] sm:$0xff]
    %v156 = vld [vmem:[#allocation7 + $0x8] sm:$0xff]
    %v157 = vld [vmem:[#allocation7 + $0x10] sm:$0xff]
    %v158 = vld [vmem:[#allocation7 + $0x18] sm:$0xff]
    %v159 = vld [vmem:[#allocation7 + $0x20] sm:$0xff]
    %v160 = vld [vmem:[#allocation7 + $0x28] sm:$0xff]
    %v161 = vld [vmem:[#allocation7 + $0x30] sm:$0xff]
    %v162 = vld [vmem:[#allocation7 + $0x38] sm:$0xff]
    %v163 = vld [vmem:[#allocation7 + $0x40] sm:$0xff]
    %v164 = vld [vmem:[#allocation7 + $0x48] sm:$0xff]
    %v165 = vld [vmem:[#allocation7 + $0x50] sm:$0xff]
    %v166 = vld [vmem:[#allocation7 + $0x58] sm:$0xff]
    %v167 = vld [vmem:[#allocation7 + $0x60] sm:$0xff]
    %v168 = vld [vmem:[#allocation7 + $0x68] sm:$0xff]
    %v169 = vld [vmem:[#allocation7 + $0x70] sm:$0xff]
    %v170 = vld [vmem:[#allocation7 + $0x78] sm:$0xff]
    %171 = vmatprep.subr.mxu0 0.0
    %172 = vmatpush1.msra.mxu0 %v155
    %173 = vmatprep.subr.mxu0 0.0
    %174 = vmatpush1.msra.mxu0 %v156
    %175 = vmatprep.subr.mxu0 0.0
    %176 = vmatpush1.msra.mxu0 %v157
    %177 = vmatprep.subr.mxu0 0.0
    %178 = vmatpush1.msra.mxu0 %v158
    %179 = vmatprep.subr.mxu0 0.0
    %180 = vmatpush1.msra.mxu0 %v159
    %181 = vmatprep.subr.mxu0 0.0
    %182 = vmatpush1.msra.mxu0 %v160
    %183 = vmatprep.subr.mxu0 0.0
    %184 = vmatpush1.msra.mxu0 %v161
    %185 = vmatprep.subr.mxu0 0.0
    %186 = vmatpush1.msra.mxu0 %v162
    %187 = vmatprep.subr.mxu0 0.0
    %188 = vmatpush1.msra.mxu0 %v163
    %189 = vmatprep.subr.mxu0 0.0
    %190 = vmatpush1.msra.mxu0 %v164
    %191 = vmatprep.subr.mxu0 0.0
    %192 = vmatpush1.msra.mxu0 %v165
    %193 = vmatprep.subr.mxu0 0.0
    %194 = vmatpush1.msra.mxu0 %v166
    %195 = vmatprep.subr.mxu0 0.0
    %196 = vmatpush1.msra.mxu0 %v167
    %197 = vmatprep.subr.mxu0 0.0
    %198 = vmatpush1.msra.mxu0 %v168
    %199 = vmatprep.subr.mxu0 0.0
    %200 = vmatpush1.msra.mxu0 %v169
    %201 = vmatprep.subr.mxu0 0.0
    %202 = vmatpush1.msra.mxu0 %v170
    %203 = vmatprep.subr.mxu0 0.0
    %204 = vmatpush1.msra.mxu0 0.0
    %205 = vmatprep.subr.mxu0 0.0
    %206 = vmatpush1.msra.mxu0 0.0
    %207 = vmatprep.subr.mxu0 0.0
    %208 = vmatpush1.msra.mxu0 0.0
    %209 = vmatprep.subr.mxu0 0.0
    %210 = vmatpush1.msra.mxu0 0.0
    %211 = vmatprep.subr.mxu0 0.0
    %212 = vmatpush1.msra.mxu0 0.0
    %213 = vmatprep.subr.mxu0 0.0
    %214 = vmatpush1.msra.mxu0 0.0
    %215 = vmatprep.subr.mxu0 0.0
    %216 = vmatpush1.msra.mxu0 0.0
    %217 = vmatprep.subr.mxu0 0.0
    %218 = vmatpush1.msra.mxu0 0.0
    %219 = vmatprep.subr.mxu0 0.0
    %220 = vmatpush1.msra.mxu0 0.0
    %221 = vmatprep.subr.mxu0 0.0
    %222 = vmatpush1.msra.mxu0 0.0
    %223 = vmatprep.subr.mxu0 0.0
    %224 = vmatpush1.msra.mxu0 0.0
    %225 = vmatprep.subr.mxu0 0.0
    %226 = vmatpush1.msra.mxu0 0.0
    %227 = vmatprep.subr.mxu0 0.0
    %228 = vmatpush1.msra.mxu0 0.0
    %229 = vmatprep.subr.mxu0 0.0
    %230 = vmatpush1.msra.mxu0 0.0
    %231 = vmatprep.subr.mxu0 0.0
    %232 = vmatpush1.msra.mxu0 0.0
    %233 = vmatprep.subr.mxu0 0.0
    %234 = vmatpush1.msra.mxu0 0.0
    %235 = vmatprep.mubr.f32.mxu0 0.0
    %236 = vmatmul.mubr.f32.gmra.mrb[0].mxu0 %v154
    %v237 = vpop.f32.mrb[0].mxu0
    %v238 = vadd.f32 0.0, %v237
    %v239 = vpop.f32.mrb[0].mxu0
    %240 = vdwg.mxu0
    %v241 = vld [vmem:[%s4] sm:$0x1]
    %v243 = vlaneseq
    %v244 = vshrl.u32 %v243, 7
    %v245 = vsub.s32 0, %v244
    %v246 = vrot.slane %v241, %v245
    %v248 = vadd.f32 %v238, %v246
    %vm249 = vcmask 64512
    %v250 = vsel %vm249, %v248, -inf
    %251 = vmax.xlane.f32.xlu0 %v250
    %v252 = vpop.xlane.xlu0 %251
    %v253 = vsub.f32 %v248, %v252
    %v254 = vmul.f32 %v253, 1.442695
    %v255 = vpow.pop %v254
    %v256 = vsel %vm249, %v255, 0.0
    %257 = vadd.xlane.f32.xlu0 %v256
    %v258 = vpop.xlane.xlu0 %257
    %v259 = vrcp.pop %v258
    %v260 = vmul.f32 %v258, %v259
    %v261 = vsub.f32 2.0, %v260
    %v262 = vmul.f32 %v259, %v261
    %v263 = vmul.f32 %v255, %v262
    %v264 = vmax.f32 %v263, 1e-10
    %v265 = vmin.f32 %v264, 1.0
    %266 = vst.msk [vmem:[#allocation8] sm:$0xff] %vm249, %v265
    // Predicated region
    $region34: #{tpu_custom_call.1} parent=1 // pred_check
      _
    $region35: #{tpu_custom_call.1} parent=1 // pred_check_branch
      %268 = sbr.rel (0) target = $region37
    $region36: #{tpu_custom_call.1} parent=1 // pred_region
      %s270 = ssub.s32 128, 128
      %271 = vsyncadd [#allocation4], %s270
      %s273 = sshll.u32 [#allocation8], 4
      %s274 = int_to_ptr.vmem [resolvable:$true] %s273
      %276 = dma.vmem_to_hbm [thread:$0]  %s274, 128, %s5, [#allocation4]
    $region37: #{tpu_custom_call.1} parent=1 // pred_fallthru
      _
    // Predicated region
    $region38: #{tpu_custom_call.1} parent=1 // pred_check
      _
    $region39: #{tpu_custom_call.1} parent=1 // pred_check_branch
      %278 = sbr.rel (0) target = $region41
    $region40: #{tpu_custom_call.1} parent=1 // pred_region
      %279 = dma.done [#allocation4], 128
    $region41: #{tpu_custom_call.1} parent=1 // pred_fallthru
      _
    %280 = vsyncpa [#allocation3], 1
    %281 = vsyncpa [#allocation6], 1
    %282 = vsyncpa [#allocation4], 1

</llo_original>
